<compile_context>
chip_gen: v7x
topology: tpu7x:2x2x1
jax: 0.10.0
libtpu: 0.0.40
codegen_flags: <defaults>
</compile_context>

<pallas_src>
import functools

import jax
import jax.numpy as jnp
import numpy as np
from jax.experimental import pallas as pl
from jax.experimental.pallas import tpu as pltpu

NUM_CLASSES = 4                      # small synthetic num_classes
FEAT_CHANNELS = [1280, 1280]         # hardcoded in the PyTorch module
OUT_CHANNELS = 256                   # hardcoded in the PyTorch module
NUM_ANCHORS = 3                      # 4*3 loc channels, num_classes*3 conf channels
LOC_CH = 4 * NUM_ANCHORS             # 12
CONF_CH = NUM_CLASSES * NUM_ANCHORS  # 12
HEAD_PAD = 128                       # loc||conf (24) zero-padded to one lane width


# -------------------------- roll-convention probe --------------------------- #

@functools.lru_cache(maxsize=None)
def _roll_is_numpy_convention():
    """One-time probe pinning down pltpu.roll's rotation direction.

    Probes a representative shape/shift (multi-sublane, non-unit shift) and
    asserts the result matches exactly one of the two possible conventions, so
    the 3x3 convolution can never be silently mirrored.
    """
    r, c, s = 256, 128, 17
    x = jnp.arange(r * c, dtype=jnp.float32).reshape(r, c)

    def probe_kernel(x_ref, o_ref):
        o_ref[...] = pltpu.roll(x_ref[...], s, 0)

    y = np.asarray(pl.pallas_call(
        probe_kernel, out_shape=jax.ShapeDtypeStruct((r, c), jnp.float32))(x))
    xn = np.asarray(x)
    if np.array_equal(y, np.roll(xn, s, 0)):
        return True
    if np.array_equal(y, np.roll(xn, -s, 0)):
        return False
    raise AssertionError("pltpu.roll convention probe failed")


def _shift_rows(y, s, numpy_roll):
    """Return z with z[r] = y[(r + s) % R]  (rows pulled from +s positions)."""
    r = y.shape[0]
    s = s % r
    if s == 0:
        return y
    amt = (r - s) if numpy_roll else s
    return pltpu.roll(y, amt, 0)


@functools.lru_cache(maxsize=None)
def _use_paired_head():
    """Pair-pack head taps only on chips with a 256-wide MXU (v6e / v7x)."""
    try:
        kind = jax.devices()[0].device_kind.lower()
    except Exception:
        return True
    # v2-v5 have 128-wide MXUs: N=128 head matmuls already fill the MXU width.
    return not any(t in kind for t in ("v2", "v3", "v4", "v5"))


# ------------------------------ fused level kernel -------------------------- #

def _fssd_level_kernel(feat_ref, w1_ref, b1_ref, w2_ref, b2_ref, wh_ref, bh_ref,
                       out_ref, *, H, W, numpy_roll, pair_head):
    """One full FSSD level for one grid step.

    feat_ref : (1, R, Cin)   bf16   R = H*W (or n*H*W when batch is flattened)
    w1_ref   : (Cin, 256)    bf16   b1_ref: (1, 256) f32
    w2_ref   : (9, 256, 256) bf16   b2_ref: (1, 256) f32
    wh_ref   : (9, 256, 128) bf16 (unpaired) or (5, 256, 256) bf16 (pair-packed)
    bh_ref   : (1, 128)      f32    (loc||conf||0)
    out_ref  : (1, R, 128)   bf16   lane-dense head output
    """
    R = feat_ref.shape[1]
    HW = H * W

    # ---- fusion conv1: 1x1 conv + bias + ReLU (single MXU matmul) ----------
    x = feat_ref[0]                                            # (R, Cin) bf16
    h1 = jnp.dot(x, w1_ref[...], preferred_element_type=jnp.float32)
    h1 = jnp.maximum(h1 + b1_ref[...], 0.0)                    # f32 VPU math

    # ---- per-pixel coords + border masks: built once, shared by both 3x3s --
    rows_i = jax.lax.broadcasted_iota(jnp.int32, (R, 1), 0)
    pix = rows_i % HW          # per-image pixel index (mod is a no-op when R==HW)
    yy = pix // W
    xx = pix - yy * W
    top, bot = yy >= 1, yy <= H - 2
    left, right = xx >= 1, xx <= W - 2

    tap_mask = []
    for dy in (-1, 0, 1):
        for dx in (-1, 0, 1):
            conds = (([top] if dy == -1 else []) + ([bot] if dy == 1 else [])
                     + ([left] if dx == -1 else []) + ([right] if dx == 1 else []))
            m = None
            for c in conds:
                m = c if m is None else (m & c)
            tap_mask.append(m)                                 # None for center tap

    def apply_tap(y, tap):
        dy, dx = tap // 3 - 1, tap % 3 - 1
        # out(yy, xx) needs in(yy+dy, xx+dx)  ->  row shift of dy*W+dx.
        y = _shift_rows(y, dy * W + dx, numpy_roll)
        m = tap_mask[tap]
        return y if m is None else jnp.where(m, y, 0.0)

    def conv3x3(inp, w_ref, bias):
        """'Same' 3x3 conv on flattened rows: 9 matmuls + XLU roll + mask."""
        acc = None
        for tap in range(9):
            y = jnp.dot(inp, w_ref[tap], preferred_element_type=jnp.float32)
            y = apply_tap(y, tap)
            acc = y if acc is None else acc + y
        return acc + bias

    def conv3x3_paired(inp, w_ref, bias):
        """Head conv with 2 taps packed per matmul along Cout (lane halves)."""
        acc = None
        for p in range(w_ref.shape[0]):                        # 5 pair matmuls
            y = jnp.dot(inp, w_ref[p], preferred_element_type=jnp.float32)
            for half in range(2):
                tap = 2 * p + half
                if tap >= 9:
                    continue                                   # tap 9 doesn't exist
                yh = apply_tap(y[:, half * HEAD_PAD:(half + 1) * HEAD_PAD], tap)
                acc = yh if acc is None else acc + yh
        return acc + bias

    # ---- fusion conv2: 3x3 conv + bias + ReLU -------------------------------
    h2 = jnp.maximum(conv3x3(h1.astype(jnp.bfloat16), w2_ref, b2_ref[...]), 0.0)

    # ---- fused loc+conf heads: one 3x3 conv, Cout lane-padded ---------------
    head_conv = conv3x3_paired if pair_head else conv3x3
    head = head_conv(h2.astype(jnp.bfloat16), wh_ref, bh_ref[...])
    out_ref[...] = head.astype(out_ref.dtype).reshape(out_ref.shape)


# --------------------------------- wrapper ---------------------------------- #

def fssd_level(feat_nhwc, w1, b1, w2, b2, wh, bh):
    n, h, w, cin = feat_nhwc.shape
    r = h * w
    paired = wh.shape[-1] == 2 * HEAD_PAD

    # Small levels are weight-DMA bound: flatten batch into rows so the ~2.3 MiB
    # of bf16 weights is fetched once and matmul M doubles.  The per-image
    # (yy, xx) masks in the kernel zero every row whose roll crosses an image
    # boundary, so the flat roll wrap-around stays harmless.
    flatten = r <= 128
    n_grid = 1 if flatten else n
    rows = n * r if flatten else r

    # Row-major NHWC -> (n, H*W, Cin) is a free reshape; bf16 cast fuses into
    # the producing backbone fusion, halving the HBM feature-map traffic.
    feat_flat = feat_nhwc.reshape(n_grid, rows, cin).astype(jnp.bfloat16)

    cost = pl.CostEstimate(
        flops=2 * n * r * (cin * OUT_CHANNELS
                           + 9 * OUT_CHANNELS * OUT_CHANNELS
                           + wh.shape[0] * OUT_CHANNELS * wh.shape[-1]),
        transcendentals=0,
        bytes_accessed=(n * r * cin * 2
                        + (w1.size + w2.size + wh.size) * 2
                        + (b1.size + b2.size + bh.size) * 4
                        + n * r * HEAD_PAD * 2),
    )

    kernel = functools.partial(_fssd_level_kernel, H=h, W=w,
                               numpy_roll=_roll_is_numpy_convention(),
                               pair_head=paired)

    def call(single_buffer_weights):
        if single_buffer_weights:
            # Grid-invariant operands: double-buffering them only wastes VMEM.
            def wspec(shape):
                return pl.BlockSpec(shape, lambda b: (0,) * len(shape),
                                    pipeline_mode=pl.Buffered(1))
        else:
            def wspec(shape):
                return pl.BlockSpec(shape, lambda b: (0,) * len(shape))

        return pl.pallas_call(
            kernel,
            out_shape=jax.ShapeDtypeStruct((n_grid, rows, HEAD_PAD), jnp.bfloat16),
            grid=(n_grid,),
            in_specs=[
                pl.BlockSpec((1, rows, cin), lambda b: (b, 0, 0)),
                wspec((cin, OUT_CHANNELS)),
                wspec((1, OUT_CHANNELS)),
                wspec(w2.shape),
                wspec((1, OUT_CHANNELS)),
                wspec(wh.shape),
                wspec((1, HEAD_PAD)),
            ],
            out_specs=pl.BlockSpec((1, rows, HEAD_PAD), lambda b: (b, 0, 0)),
            compiler_params=pltpu.CompilerParams(
                dimension_semantics=("parallel",),     # batch across TCs on v7x
                vmem_limit_bytes=32 * 1024 * 1024,     # headroom vs v5e's 16 MiB default
            ),
            cost_estimate=cost,
        )(feat_flat,
          w1.astype(jnp.bfloat16), b1,
          w2.astype(jnp.bfloat16), b2,
          wh.astype(jnp.bfloat16), bh)

    try:
        out = call(True)
    except Exception:
        # Older builds may reject pipeline_mode=pl.Buffered(1): fall back to the
        # default double-buffered pipeline (identical results, a bit more VMEM).
        out = call(False)

    return out.reshape(n, r, HEAD_PAD).astype(jnp.float32)


# ------------------------------ FSSD (JAX side) ------------------------------ #

def init_params(key):
    """Deterministic synthetic parameters (same shapes as the PyTorch module).

    Conv weights are stored as (kh*kw, Cin, Cout); PyTorch's (Cout, Cin, kh, kw)
    maps to w[ky*3+kx, cin, cout].
    """
    params = []
    for cin in FEAT_CHANNELS:
        key, *ks = jax.random.split(key, 9)
        params.append(dict(
            w1=jax.random.normal(ks[0], (cin, OUT_CHANNELS), jnp.float32) / np.sqrt(cin),
            b1=jax.random.normal(ks[1], (1, OUT_CHANNELS), jnp.float32) * 0.01,
            w2=jax.random.normal(ks[2], (9, OUT_CHANNELS, OUT_CHANNELS), jnp.float32)
               / np.sqrt(9 * OUT_CHANNELS),
            b2=jax.random.normal(ks[3], (1, OUT_CHANNELS), jnp.float32) * 0.01,
            wl=jax.random.normal(ks[4], (9, OUT_CHANNELS, LOC_CH), jnp.float32)
               / np.sqrt(9 * OUT_CHANNELS),
            bl=jax.random.normal(ks[5], (1, LOC_CH), jnp.float32) * 0.01,
            wc=jax.random.normal(ks[6], (9, OUT_CHANNELS, CONF_CH), jnp.float32)
               / np.sqrt(9 * OUT_CHANNELS),
            bc=jax.random.normal(ks[7], (1, CONF_CH), jnp.float32) * 0.01,
        ))
    return params


def _pack_head_params(p, paired):
    """Concat loc+conf weights; lane-pad Cout 24->128; optionally pair-pack taps."""
    w_cat = jnp.concatenate([p['wl'], p['wc']], axis=-1)               # (9, 256, 24)
    w_tap = jnp.zeros((9, OUT_CHANNELS, HEAD_PAD), jnp.float32)
    w_tap = w_tap.at[:, :, :LOC_CH + CONF_CH].set(w_cat)
    bh = jnp.zeros((1, HEAD_PAD), jnp.float32)
    bh = bh.at[:, :LOC_CH].set(p['bl'])
    bh = bh.at[:, LOC_CH:LOC_CH + CONF_CH].set(p['bc'])
    if not paired:
        return w_tap, bh
    # Taps (2t, 2t+1) share one matmul: even taps in lanes [0:128], odd taps in
    # lanes [128:256]; tap 8 leaves the second half zero.
    wh = jnp.zeros((5, OUT_CHANNELS, 2 * HEAD_PAD), jnp.float32)
    wh = wh.at[:, :, :HEAD_PAD].set(w_tap[0::2])
    wh = wh.at[:4, :, HEAD_PAD:].set(w_tap[1::2])
    return wh, bh


def synthetic_backbone(x_nchw, proj_mats):
    # TODO(synk): the real backbone is an injected nn.Module; here it is a
    # deterministic pool + channel-lift stub producing [1280, 1280]-channel maps.
    x = jnp.transpose(x_nchw, (0, 2, 3, 1))  # NCHW -> NHWC
    feats = []
    for stride, proj in zip((1, 2), proj_mats):
        n, h, w, c = x.shape
        pooled = x.reshape(n, h // stride, stride, w // stride, stride, c).mean(axis=(2, 4))
        feats.append(jnp.tanh(jnp.einsum('nhwc,cd->nhwd', pooled, proj)))
    return feats


def fssd_forward(x_nchw, params, backbone_proj):
    feats = synthetic_backbone(x_nchw, backbone_proj)
    n = x_nchw.shape[0]
    paired = _use_paired_head()
    loc_preds, conf_preds = [], []
    # TODO(synk): hide level-2's weight DMA behind level-1 compute (cross-call
    # SEMAPHORE/VMEM futures or a merged two-level pallas_call) and add a
    # row-tiled grid axis + im2col stacked-K variant for v7x once feature maps
    # outgrow toy sizes.
    for feat, p in zip(feats, params):
        wh, bh = _pack_head_params(p, paired)
        head = fssd_level(feat, p['w1'], p['b1'], p['w2'], p['b2'], wh, bh)
        # head is (n, H*W, 128) in NHWC channel order -> matches permute(0,2,3,1).
        loc_preds.append(head[:, :, :LOC_CH].reshape(n, -1, 4))
        conf_preds.append(
            head[:, :, LOC_CH:LOC_CH + CONF_CH].reshape(n, -1, NUM_CLASSES))
    return jnp.concatenate(loc_preds, axis=1), jnp.concatenate(conf_preds, axis=1)


# --------------------------- pure-JAX reference ------------------------------ #

def _conv_ref(x, w, b, padding):
    y = jax.lax.conv_general_dilated(x, w, (1, 1), padding,
                                     dimension_numbers=('NHWC', 'HWIO', 'NHWC'))
    return y + b.reshape(1, 1, 1, -1)


def fssd_reference(x_nchw, params, backbone_proj):
    feats = synthetic_backbone(x_nchw, backbone_proj)
    n = x_nchw.shape[0]
    loc_preds, conf_preds = [], []
    for feat, p in zip(feats, params):
        cin = p['w1'].shape[0]
        h1 = jax.nn.relu(_conv_ref(feat, p['w1'].reshape(1, 1, cin, -1), p['b1'], 'VALID'))
        h2 = jax.nn.relu(_conv_ref(h1, p['w2'].reshape(3, 3, OUT_CHANNELS, -1), p['b2'], 'SAME'))
        loc = _conv_ref(h2, p['wl'].reshape(3, 3, OUT_CHANNELS, -1), p['bl'], 'SAME')
        conf = _conv_ref(h2, p['wc'].reshape(3, 3, OUT_CHANNELS, -1), p['bc'], 'SAME')
        loc_preds.append(loc.reshape(n, -1, 4))
        conf_preds.append(conf.reshape(n, -1, NUM_CLASSES))
    return jnp.concatenate(loc_preds, axis=1), jnp.concatenate(conf_preds, axis=1)


# Evaluate the roll-convention probe once at import so it never stalls a traced
# forward pass (lru_cache retries lazily if no device is available here).
try:
    _roll_is_numpy_convention()
except Exception:
    pass


# ----------------------------------- main ------------------------------------ #

if __name__ == "__main__":
    key = jax.random.PRNGKey(0)
    kx, kp, kb1, kb2 = jax.random.split(key, 4)

    x = jax.random.normal(kx, (2, 4, 16, 16), jnp.float32)   # NCHW, like PyTorch
    params = init_params(kp)
    backbone_proj = [
        jax.random.normal(kb1, (4, FEAT_CHANNELS[0]), jnp.float32) * 0.5,
        jax.random.normal(kb2, (4, FEAT_CHANNELS[1]), jnp.float32) * 0.5,
    ]

    loc, conf = fssd_forward(x, params, backbone_proj)
    loc, conf = jax.block_until_ready((loc, conf))

    loc_ref, conf_ref = jax.block_until_ready(fssd_reference(x, params, backbone_proj))

    n_priors = (16 * 16 + 8 * 8) * NUM_ANCHORS
    assert loc.shape == (2, n_priors, 4), loc.shape
    assert conf.shape == (2, n_priors, NUM_CLASSES), conf.shape
    assert np.allclose(np.asarray(loc), np.asarray(loc_ref), atol=5e-2, rtol=5e-2)
    assert np.allclose(np.asarray(conf), np.asarray(conf_ref), atol=5e-2, rtol=5e-2)

    print("KERNEL_OK")
</pallas_src>

<mosaic_0001>
module attributes {stable_mosaic.version = 11 : i64} {
  func.func @probe_kernel(%arg0: memref<256x128xf32, #tpu.memory_space<vmem>>, %arg1: memref<256x128xf32, #tpu.memory_space<vmem>>) attributes {dimension_semantics = [], scalar_prefetch = 0 : i64, scratch_operands = 0 : i64, tpu.core_type = #tpu.core_type<tc>} {
    %c0 = arith.constant 0 : index
    %c0_0 = arith.constant 0 : index
    %0 = vector.load %arg0[%c0, %c0_0] : memref<256x128xf32, #tpu.memory_space<vmem>>, vector<256x128xf32>
    %c17_i32 = arith.constant 17 : i32
    %1 = tpu.dynamic_rotate %0 by %c17_i32 dim 0 : vector<256x128xf32>, i32 -> vector<256x128xf32>
    %c0_1 = arith.constant 0 : index
    %c0_2 = arith.constant 0 : index
    %2 = vector.load %arg1[%c0_1, %c0_2] : memref<256x128xf32, #tpu.memory_space<vmem>>, vector<256x128xf32>
    tpu.vector_store %arg1[%c0_1, %c0_2], %1 {strides = array<i32>} : memref<256x128xf32, #tpu.memory_space<vmem>>, vector<256x128xf32>,
    return
  }
}

module attributes {stable_mosaic.version = 11 : i64} {
  func.func @probe_kernel(%arg0: memref<256x128xf32, #tpu.memory_space<vmem>>, %arg1: memref<256x128xf32, #tpu.memory_space<vmem>>) attributes {dimension_semantics = [], scalar_prefetch = 0 : i64, scratch_operands = 0 : i64, tpu.core_type = #tpu.core_type<tc>} {
    %c0 = arith.constant 0 : index
    %c0_0 = arith.constant 0 : index
    %0 = vector.load %arg0[%c0, %c0_0] : memref<256x128xf32, #tpu.memory_space<vmem>>, vector<256x128xf32>
    %c17_i32 = arith.constant 17 : i32
    %1 = tpu.dynamic_rotate %0 by %c17_i32 dim 0 : vector<256x128xf32>, i32 -> vector<256x128xf32>
    %c0_1 = arith.constant 0 : index
    %c0_2 = arith.constant 0 : index
    %2 = vector.load %arg1[%c0_1, %c0_2] : memref<256x128xf32, #tpu.memory_space<vmem>>, vector<256x128xf32>
    tpu.vector_store %arg1[%c0_1, %c0_2], %1 {strides = array<i32>} : memref<256x128xf32, #tpu.memory_space<vmem>>, vector<256x128xf32>,
    return
  }
}

</mosaic_0001>

<llo_original>
// kernel: tpu_custom_call.1
$region0: #{tpu_custom_call.1}
  #allocation0 [shape = 'u32[]', space=smem, size = 0x4, offset = 0x4, fixed_abs, tag = 'smem constant byte address 0x4 - core index']
  #allocation1 [shape = 'u32[144,128]{1,0:T(1,128)}', space=vmem, size = 0x12000, scoped, tag = 'internal scratch']
  %s0 = inlined_call_operand.hbm [shape: f32[256,128], index: 0, kind: input, shape index: {}]
  %s1 = inlined_call_operand.hbm [shape: f32[256,128], index: 1, kind: output, shape index: {}]
  %s2 = sld [smem:[#allocation0]]
  $region18: #{tpu_custom_call.1} parent=0
    _
  %s4 = ssub.s32 1, %s2
  %s5 = scalar_select 0, %s4, %s2
  $region1: #{tpu_custom_call.1} parent=0
    #allocation2 [shape = 'u8[131072]{0}', space=vmem, size = 0x20000, scoped, tag = 'input window, operand 0, single buffered']
    #allocation3 [shape = 's32[1]{0}', space=sflag, size = 0x4, scoped, tag = 'scoped memory for tpu_custom_call.1']
    #allocation4 [shape = 's32[1]{0}', space=sflag, size = 0x4, scoped, tag = 'scoped memory for tpu_custom_call.1']
    #allocation5 [shape = 'u8[131072]{0}', space=vmem, size = 0x20000, scoped, tag = 'output window, operand 0, single buffered']
    %6 = vsyncpa [#allocation3], 0
    %7 = vsyncpa [#allocation4], 0
    // Predicated region
    $region2: #{tpu_custom_call.1} parent=1 // pred_check
      _
    $region3: #{tpu_custom_call.1} parent=1 // pred_check_branch
      %9 = sbr.rel (0) target = $region5
    $region4: #{tpu_custom_call.1} parent=1 // pred_region
      %s11 = ssub.s32 4096, 4096
      %12 = vsyncadd [#allocation3], %s11
      %s13 = sshll.u32 [#allocation2], 4
      %s14 = int_to_ptr.vmem [resolvable:$true] %s13
      %19 = dma.hbm_to_vmem [thread:$0]  %s0, 4096, %s14, [#allocation3], 128, 128, 8
    $region5: #{tpu_custom_call.1} parent=1 // pred_fallthru
      _
    // Predicated region
    $region6: #{tpu_custom_call.1} parent=1 // pred_check
      _
    $region7: #{tpu_custom_call.1} parent=1 // pred_check_branch
      %21 = sbr.rel (0) target = $region9
    $region8: #{tpu_custom_call.1} parent=1 // pred_region
      %22 = dma.done [#allocation3], 4096
    $region9: #{tpu_custom_call.1} parent=1 // pred_fallthru
      _
    %v23 = vld [vmem:[#allocation2] sm:$0xff]
    %v24 = vld [vmem:[#allocation2 + $0x8] sm:$0xff]
    %v25 = vld [vmem:[#allocation2 + $0x10] sm:$0xff]
    %v26 = vld [vmem:[#allocation2 + $0x18] sm:$0xff]
    %v27 = vld [vmem:[#allocation2 + $0x20] sm:$0xff]
    %v28 = vld [vmem:[#allocation2 + $0x28] sm:$0xff]
    %v29 = vld [vmem:[#allocation2 + $0x30] sm:$0xff]
    %v30 = vld [vmem:[#allocation2 + $0x38] sm:$0xff]
    %v31 = vld [vmem:[#allocation2 + $0x40] sm:$0xff]
    %v32 = vld [vmem:[#allocation2 + $0x48] sm:$0xff]
    %v33 = vld [vmem:[#allocation2 + $0x50] sm:$0xff]
    %v34 = vld [vmem:[#allocation2 + $0x58] sm:$0xff]
    %v35 = vld [vmem:[#allocation2 + $0x60] sm:$0xff]
    %v36 = vld [vmem:[#allocation2 + $0x68] sm:$0xff]
    %v37 = vld [vmem:[#allocation2 + $0x70] sm:$0xff]
    %v38 = vld [vmem:[#allocation2 + $0x78] sm:$0xff]
    %v39 = vld [vmem:[#allocation2 + $0x80] sm:$0xff]
    %v40 = vld [vmem:[#allocation2 + $0x88] sm:$0xff]
    %v41 = vld [vmem:[#allocation2 + $0x90] sm:$0xff]
    %v42 = vld [vmem:[#allocation2 + $0x98] sm:$0xff]
    %v43 = vld [vmem:[#allocation2 + $0xa0] sm:$0xff]
    %v44 = vld [vmem:[#allocation2 + $0xa8] sm:$0xff]
    %v45 = vld [vmem:[#allocation2 + $0xb0] sm:$0xff]
    %v46 = vld [vmem:[#allocation2 + $0xb8] sm:$0xff]
    %v47 = vld [vmem:[#allocation2 + $0xc0] sm:$0xff]
    %v48 = vld [vmem:[#allocation2 + $0xc8] sm:$0xff]
    %v49 = vld [vmem:[#allocation2 + $0xd0] sm:$0xff]
    %v50 = vld [vmem:[#allocation2 + $0xd8] sm:$0xff]
    %v51 = vld [vmem:[#allocation2 + $0xe0] sm:$0xff]
    %v52 = vld [vmem:[#allocation2 + $0xe8] sm:$0xff]
    %v53 = vld [vmem:[#allocation2 + $0xf0] sm:$0xff]
    %v54 = vld [vmem:[#allocation2 + $0xf8] sm:$0xff]
    %v55 = vrot.slane %v23, 7
    %v56 = vrot.slane %v24, 7
    %v57 = vrot.slane %v25, 7
    %v58 = vrot.slane %v26, 7
    %v59 = vrot.slane %v27, 7
    %v60 = vrot.slane %v28, 7
    %v61 = vrot.slane %v29, 7
    %v62 = vrot.slane %v30, 7
    %v63 = vrot.slane %v31, 7
    %v64 = vrot.slane %v32, 7
    %v65 = vrot.slane %v33, 7
    %v66 = vrot.slane %v34, 7
    %v67 = vrot.slane %v35, 7
    %v68 = vrot.slane %v36, 7
    %v69 = vrot.slane %v37, 7
    %v70 = vrot.slane %v38, 7
    %v71 = vrot.slane %v39, 7
    %v72 = vrot.slane %v40, 7
    %v73 = vrot.slane %v41, 7
    %v74 = vrot.slane %v42, 7
    %v75 = vrot.slane %v43, 7
    %v76 = vrot.slane %v44, 7
    %v77 = vrot.slane %v45, 7
    %v78 = vrot.slane %v46, 7
    %v79 = vrot.slane %v47, 7
    %v80 = vrot.slane %v48, 7
    %v81 = vrot.slane %v49, 7
    %v82 = vrot.slane %v50, 7
    %v83 = vrot.slane %v51, 7
    %v84 = vrot.slane %v52, 7
    %v85 = vrot.slane %v53, 7
    %v86 = vrot.slane %v54, 7
    %v87 = vlaneseq
    %v88 = vshrl.u32 %v87, 7
    %vm89 = vcmp.lt.s32.totalorder %v88, 1
    %v90 = vsel %vm89, %v85, %v86
    %v91 = vsel %vm89, %v84, %v85
    %v92 = vsel %vm89, %v83, %v84
    %v93 = vsel %vm89, %v82, %v83
    %v94 = vsel %vm89, %v81, %v82
    %v95 = vsel %vm89, %v80, %v81
    %v96 = vsel %vm89, %v79, %v80
    %v97 = vsel %vm89, %v78, %v79
    %v98 = vsel %vm89, %v77, %v78
    %v99 = vsel %vm89, %v76, %v77
    %v100 = vsel %vm89, %v75, %v76
    %v101 = vsel %vm89, %v74, %v75
    %v102 = vsel %vm89, %v73, %v74
    %v103 = vsel %vm89, %v72, %v73
    %v104 = vsel %vm89, %v71, %v72
    %v105 = vsel %vm89, %v70, %v71
    %v106 = vsel %vm89, %v69, %v70
    %v107 = vsel %vm89, %v68, %v69
    %v108 = vsel %vm89, %v67, %v68
    %v109 = vsel %vm89, %v66, %v67
    %v110 = vsel %vm89, %v65, %v66
    %v111 = vsel %vm89, %v64, %v65
    %v112 = vsel %vm89, %v63, %v64
    %v113 = vsel %vm89, %v62, %v63
    %v114 = vsel %vm89, %v61, %v62
    %v115 = vsel %vm89, %v60, %v61
    %v116 = vsel %vm89, %v59, %v60
    %v117 = vsel %vm89, %v58, %v59
    %v118 = vsel %vm89, %v57, %v58
    %v119 = vsel %vm89, %v56, %v57
    %v120 = vsel %vm89, %v55, %v56
    %v121 = vsel %vm89, %v86, %v55
    %122 = vst [vmem:[#allocation5] sm:$0xff] %v91
    %123 = vst [vmem:[#allocation5 + $0x8] sm:$0xff] %v90
    %124 = vst [vmem:[#allocation5 + $0x10] sm:$0xff] %v121
    %125 = vst [vmem:[#allocation5 + $0x18] sm:$0xff] %v120
    %126 = vst [vmem:[#allocation5 + $0x20] sm:$0xff] %v119
    %127 = vst [vmem:[#allocation5 + $0x28] sm:$0xff] %v118
    %128 = vst [vmem:[#allocation5 + $0x30] sm:$0xff] %v117
    %129 = vst [vmem:[#allocation5 + $0x38] sm:$0xff] %v116
    %130 = vst [vmem:[#allocation5 + $0x40] sm:$0xff] %v115
    %131 = vst [vmem:[#allocation5 + $0x48] sm:$0xff] %v114
    %132 = vst [vmem:[#allocation5 + $0x50] sm:$0xff] %v113
    %133 = vst [vmem:[#allocation5 + $0x58] sm:$0xff] %v112
    %134 = vst [vmem:[#allocation5 + $0x60] sm:$0xff] %v111
    %135 = vst [vmem:[#allocation5 + $0x68] sm:$0xff] %v110
    %136 = vst [vmem:[#allocation5 + $0x70] sm:$0xff] %v109
    %137 = vst [vmem:[#allocation5 + $0x78] sm:$0xff] %v108
    %138 = vst [vmem:[#allocation5 + $0x80] sm:$0xff] %v107
    %139 = vst [vmem:[#allocation5 + $0x88] sm:$0xff] %v106
    %140 = vst [vmem:[#allocation5 + $0x90] sm:$0xff] %v105
    %141 = vst [vmem:[#allocation5 + $0x98] sm:$0xff] %v104
    %142 = vst [vmem:[#allocation5 + $0xa0] sm:$0xff] %v103
    %143 = vst [vmem:[#allocation5 + $0xa8] sm:$0xff] %v102
    %144 = vst [vmem:[#allocation5 + $0xb0] sm:$0xff] %v101
    %145 = vst [vmem:[#allocation5 + $0xb8] sm:$0xff] %v100
    %146 = vst [vmem:[#allocation5 + $0xc0] sm:$0xff] %v99
    %147 = vst [vmem:[#allocation5 + $0xc8] sm:$0xff] %v98
    %148 = vst [vmem:[#allocation5 + $0xd0] sm:$0xff] %v97
    %149 = vst [vmem:[#allocation5 + $0xd8] sm:$0xff] %v96
    %150 = vst [vmem:[#allocation5 + $0xe0] sm:$0xff] %v95
    %151 = vst [vmem:[#allocation5 + $0xe8] sm:$0xff] %v94
    %152 = vst [vmem:[#allocation5 + $0xf0] sm:$0xff] %v93
    %153 = vst [vmem:[#allocation5 + $0xf8] sm:$0xff] %v92
    // Predicated region
    $region10: #{tpu_custom_call.1} parent=1 // pred_check
      _
    $region11: #{tpu_custom_call.1} parent=1 // pred_check_branch
      %155 = sbr.rel (0) target = $region13
    $region12: #{tpu_custom_call.1} parent=1 // pred_region
      %s157 = ssub.s32 4096, 4096
      %158 = vsyncadd [#allocation4], %s157
      %s159 = sshll.u32 [#allocation5], 4
      %s160 = int_to_ptr.vmem [resolvable:$true] %s159
      %165 = dma.vmem_to_hbm [thread:$0]  %s160, 4096, %s1, [#allocation4], 128, 128, 8
    $region13: #{tpu_custom_call.1} parent=1 // pred_fallthru
      _
    // Predicated region
    $region14: #{tpu_custom_call.1} parent=1 // pred_check
      _
    $region15: #{tpu_custom_call.1} parent=1 // pred_check_branch
      %167 = sbr.rel (0) target = $region17
    $region16: #{tpu_custom_call.1} parent=1 // pred_region
      %168 = dma.done [#allocation4], 4096
    $region17: #{tpu_custom_call.1} parent=1 // pred_fallthru
      _
    %169 = vsyncpa [#allocation3], 1
    %170 = vsyncpa [#allocation4], 1

// kernel: tpu_custom_call.1
$region0: #{tpu_custom_call.1}
  #allocation0 [shape = 'u32[]', space=smem, size = 0x4, offset = 0x4, fixed_abs, tag = 'smem constant byte address 0x4 - core index']
  #allocation1 [shape = 'u32[144,128]{1,0:T(1,128)}', space=vmem, size = 0x12000, scoped, tag = 'internal scratch']
  %s0 = inlined_call_operand.hbm [shape: f32[256,128], index: 0, kind: input, shape index: {}]
  %s1 = inlined_call_operand.hbm [shape: f32[256,128], index: 1, kind: output, shape index: {}]
  %s2 = sld [smem:[#allocation0]]
  $region18: #{tpu_custom_call.1} parent=0
    _
  %s4 = ssub.s32 1, %s2
  %s5 = scalar_select 0, %s4, %s2
  $region1: #{tpu_custom_call.1} parent=0
    #allocation2 [shape = 'u8[131072]{0}', space=vmem, size = 0x20000, scoped, tag = 'input window, operand 0, single buffered']
    #allocation3 [shape = 's32[1]{0}', space=sflag, size = 0x4, scoped, tag = 'scoped memory for tpu_custom_call.1']
    #allocation4 [shape = 's32[1]{0}', space=sflag, size = 0x4, scoped, tag = 'scoped memory for tpu_custom_call.1']
    #allocation5 [shape = 'u8[131072]{0}', space=vmem, size = 0x20000, scoped, tag = 'output window, operand 0, single buffered']
    %6 = vsyncpa [#allocation3], 0
    %7 = vsyncpa [#allocation4], 0
    // Predicated region
    $region2: #{tpu_custom_call.1} parent=1 // pred_check
      _
    $region3: #{tpu_custom_call.1} parent=1 // pred_check_branch
      %9 = sbr.rel (0) target = $region5
    $region4: #{tpu_custom_call.1} parent=1 // pred_region
      %s11 = ssub.s32 4096, 4096
      %12 = vsyncadd [#allocation3], %s11
      %s13 = sshll.u32 [#allocation2], 4
      %s14 = int_to_ptr.vmem [resolvable:$true] %s13
      %19 = dma.hbm_to_vmem [thread:$0]  %s0, 4096, %s14, [#allocation3], 128, 128, 8
    $region5: #{tpu_custom_call.1} parent=1 // pred_fallthru
      _
    // Predicated region
    $region6: #{tpu_custom_call.1} parent=1 // pred_check
      _
    $region7: #{tpu_custom_call.1} parent=1 // pred_check_branch
      %21 = sbr.rel (0) target = $region9
    $region8: #{tpu_custom_call.1} parent=1 // pred_region
      %22 = dma.done [#allocation3], 4096
    $region9: #{tpu_custom_call.1} parent=1 // pred_fallthru
      _
    %v23 = vld [vmem:[#allocation2] sm:$0xff]
    %v24 = vld [vmem:[#allocation2 + $0x8] sm:$0xff]
    %v25 = vld [vmem:[#allocation2 + $0x10] sm:$0xff]
    %v26 = vld [vmem:[#allocation2 + $0x18] sm:$0xff]
    %v27 = vld [vmem:[#allocation2 + $0x20] sm:$0xff]
    %v28 = vld [vmem:[#allocation2 + $0x28] sm:$0xff]
    %v29 = vld [vmem:[#allocation2 + $0x30] sm:$0xff]
    %v30 = vld [vmem:[#allocation2 + $0x38] sm:$0xff]
    %v31 = vld [vmem:[#allocation2 + $0x40] sm:$0xff]
    %v32 = vld [vmem:[#allocation2 + $0x48] sm:$0xff]
    %v33 = vld [vmem:[#allocation2 + $0x50] sm:$0xff]
    %v34 = vld [vmem:[#allocation2 + $0x58] sm:$0xff]
    %v35 = vld [vmem:[#allocation2 + $0x60] sm:$0xff]
    %v36 = vld [vmem:[#allocation2 + $0x68] sm:$0xff]
    %v37 = vld [vmem:[#allocation2 + $0x70] sm:$0xff]
    %v38 = vld [vmem:[#allocation2 + $0x78] sm:$0xff]
    %v39 = vld [vmem:[#allocation2 + $0x80] sm:$0xff]
    %v40 = vld [vmem:[#allocation2 + $0x88] sm:$0xff]
    %v41 = vld [vmem:[#allocation2 + $0x90] sm:$0xff]
    %v42 = vld [vmem:[#allocation2 + $0x98] sm:$0xff]
    %v43 = vld [vmem:[#allocation2 + $0xa0] sm:$0xff]
    %v44 = vld [vmem:[#allocation2 + $0xa8] sm:$0xff]
    %v45 = vld [vmem:[#allocation2 + $0xb0] sm:$0xff]
    %v46 = vld [vmem:[#allocation2 + $0xb8] sm:$0xff]
    %v47 = vld [vmem:[#allocation2 + $0xc0] sm:$0xff]
    %v48 = vld [vmem:[#allocation2 + $0xc8] sm:$0xff]
    %v49 = vld [vmem:[#allocation2 + $0xd0] sm:$0xff]
    %v50 = vld [vmem:[#allocation2 + $0xd8] sm:$0xff]
    %v51 = vld [vmem:[#allocation2 + $0xe0] sm:$0xff]
    %v52 = vld [vmem:[#allocation2 + $0xe8] sm:$0xff]
    %v53 = vld [vmem:[#allocation2 + $0xf0] sm:$0xff]
    %v54 = vld [vmem:[#allocation2 + $0xf8] sm:$0xff]
    %v55 = vrot.slane %v23, 7
    %v56 = vrot.slane %v24, 7
    %v57 = vrot.slane %v25, 7
    %v58 = vrot.slane %v26, 7
    %v59 = vrot.slane %v27, 7
    %v60 = vrot.slane %v28, 7
    %v61 = vrot.slane %v29, 7
    %v62 = vrot.slane %v30, 7
    %v63 = vrot.slane %v31, 7
    %v64 = vrot.slane %v32, 7
    %v65 = vrot.slane %v33, 7
    %v66 = vrot.slane %v34, 7
    %v67 = vrot.slane %v35, 7
    %v68 = vrot.slane %v36, 7
    %v69 = vrot.slane %v37, 7
    %v70 = vrot.slane %v38, 7
    %v71 = vrot.slane %v39, 7
    %v72 = vrot.slane %v40, 7
    %v73 = vrot.slane %v41, 7
    %v74 = vrot.slane %v42, 7
    %v75 = vrot.slane %v43, 7
    %v76 = vrot.slane %v44, 7
    %v77 = vrot.slane %v45, 7
    %v78 = vrot.slane %v46, 7
    %v79 = vrot.slane %v47, 7
    %v80 = vrot.slane %v48, 7
    %v81 = vrot.slane %v49, 7
    %v82 = vrot.slane %v50, 7
    %v83 = vrot.slane %v51, 7
    %v84 = vrot.slane %v52, 7
    %v85 = vrot.slane %v53, 7
    %v86 = vrot.slane %v54, 7
    %v87 = vlaneseq
    %v88 = vshrl.u32 %v87, 7
    %vm89 = vcmp.lt.s32.totalorder %v88, 1
    %v90 = vsel %vm89, %v85, %v86
    %v91 = vsel %vm89, %v84, %v85
    %v92 = vsel %vm89, %v83, %v84
    %v93 = vsel %vm89, %v82, %v83
    %v94 = vsel %vm89, %v81, %v82
    %v95 = vsel %vm89, %v80, %v81
    %v96 = vsel %vm89, %v79, %v80
    %v97 = vsel %vm89, %v78, %v79
    %v98 = vsel %vm89, %v77, %v78
    %v99 = vsel %vm89, %v76, %v77
    %v100 = vsel %vm89, %v75, %v76
    %v101 = vsel %vm89, %v74, %v75
    %v102 = vsel %vm89, %v73, %v74
    %v103 = vsel %vm89, %v72, %v73
    %v104 = vsel %vm89, %v71, %v72
    %v105 = vsel %vm89, %v70, %v71
    %v106 = vsel %vm89, %v69, %v70
    %v107 = vsel %vm89, %v68, %v69
    %v108 = vsel %vm89, %v67, %v68
    %v109 = vsel %vm89, %v66, %v67
    %v110 = vsel %vm89, %v65, %v66
    %v111 = vsel %vm89, %v64, %v65
    %v112 = vsel %vm89, %v63, %v64
    %v113 = vsel %vm89, %v62, %v63
    %v114 = vsel %vm89, %v61, %v62
    %v115 = vsel %vm89, %v60, %v61
    %v116 = vsel %vm89, %v59, %v60
    %v117 = vsel %vm89, %v58, %v59
    %v118 = vsel %vm89, %v57, %v58
    %v119 = vsel %vm89, %v56, %v57
    %v120 = vsel %vm89, %v55, %v56
    %v121 = vsel %vm89, %v86, %v55
    %122 = vst [vmem:[#allocation5] sm:$0xff] %v91
    %123 = vst [vmem:[#allocation5 + $0x8] sm:$0xff] %v90
    %124 = vst [vmem:[#allocation5 + $0x10] sm:$0xff] %v121
    %125 = vst [vmem:[#allocation5 + $0x18] sm:$0xff] %v120
    %126 = vst [vmem:[#allocation5 + $0x20] sm:$0xff] %v119
    %127 = vst [vmem:[#allocation5 + $0x28] sm:$0xff] %v118
    %128 = vst [vmem:[#allocation5 + $0x30] sm:$0xff] %v117
    %129 = vst [vmem:[#allocation5 + $0x38] sm:$0xff] %v116
    %130 = vst [vmem:[#allocation5 + $0x40] sm:$0xff] %v115
    %131 = vst [vmem:[#allocation5 + $0x48] sm:$0xff] %v114
    %132 = vst [vmem:[#allocation5 + $0x50] sm:$0xff] %v113
    %133 = vst [vmem:[#allocation5 + $0x58] sm:$0xff] %v112
    %134 = vst [vmem:[#allocation5 + $0x60] sm:$0xff] %v111
    %135 = vst [vmem:[#allocation5 + $0x68] sm:$0xff] %v110
    %136 = vst [vmem:[#allocation5 + $0x70] sm:$0xff] %v109
    %137 = vst [vmem:[#allocation5 + $0x78] sm:$0xff] %v108
    %138 = vst [vmem:[#allocation5 + $0x80] sm:$0xff] %v107
    %139 = vst [vmem:[#allocation5 + $0x88] sm:$0xff] %v106
    %140 = vst [vmem:[#allocation5 + $0x90] sm:$0xff] %v105
    %141 = vst [vmem:[#allocation5 + $0x98] sm:$0xff] %v104
    %142 = vst [vmem:[#allocation5 + $0xa0] sm:$0xff] %v103
    %143 = vst [vmem:[#allocation5 + $0xa8] sm:$0xff] %v102
    %144 = vst [vmem:[#allocation5 + $0xb0] sm:$0xff] %v101
    %145 = vst [vmem:[#allocation5 + $0xb8] sm:$0xff] %v100
    %146 = vst [vmem:[#allocation5 + $0xc0] sm:$0xff] %v99
    %147 = vst [vmem:[#allocation5 + $0xc8] sm:$0xff] %v98
    %148 = vst [vmem:[#allocation5 + $0xd0] sm:$0xff] %v97
    %149 = vst [vmem:[#allocation5 + $0xd8] sm:$0xff] %v96
    %150 = vst [vmem:[#allocation5 + $0xe0] sm:$0xff] %v95
    %151 = vst [vmem:[#allocation5 + $0xe8] sm:$0xff] %v94
    %152 = vst [vmem:[#allocation5 + $0xf0] sm:$0xff] %v93
    %153 = vst [vmem:[#allocation5 + $0xf8] sm:$0xff] %v92
    // Predicated region
    $region10: #{tpu_custom_call.1} parent=1 // pred_check
      _
    $region11: #{tpu_custom_call.1} parent=1 // pred_check_branch
      %155 = sbr.rel (0) target = $region13
    $region12: #{tpu_custom_call.1} parent=1 // pred_region
      %s157 = ssub.s32 4096, 4096
      %158 = vsyncadd [#allocation4], %s157
      %s159 = sshll.u32 [#allocation5], 4
      %s160 = int_to_ptr.vmem [resolvable:$true] %s159
      %165 = dma.vmem_to_hbm [thread:$0]  %s160, 4096, %s1, [#allocation4], 128, 128, 8
    $region13: #{tpu_custom_call.1} parent=1 // pred_fallthru
      _
    // Predicated region
    $region14: #{tpu_custom_call.1} parent=1 // pred_check
      _
    $region15: #{tpu_custom_call.1} parent=1 // pred_check_branch
      %167 = sbr.rel (0) target = $region17
    $region16: #{tpu_custom_call.1} parent=1 // pred_region
      %168 = dma.done [#allocation4], 4096
    $region17: #{tpu_custom_call.1} parent=1 // pred_fallthru
      _
    %169 = vsyncpa [#allocation3], 1
    %170 = vsyncpa [#allocation4], 1

</llo_original>
